<compile_context>
chip_gen: v6e
topology: v6e:2x2x1
jax: 0.10.0
libtpu: 0.0.40
codegen_flags: <defaults>
</compile_context>

<pallas_src>
import functools

import jax
import jax.numpy as jnp
from jax import lax
from jax.experimental import pallas as pl
from jax.experimental.pallas import tpu as pltpu


# ----------------------------------------------------------------------------
# Pallas kernel 1: pixel-wise softmax cross-entropy partial sums (the 'seg' branch)
# ----------------------------------------------------------------------------
def _ce_kernel(logits_ref, tgt_ref, out_ref, *, hw, tile_rows, num_classes):
    # logits_ref: (1, C, TILE_ROWS, 128)  pixels dense across (sublane, lane)
    # tgt_ref:    (1, 1, TILE_ROWS, 128)  int32 class index
    # out_ref:    (1, 1, 8, 128)          per-block partial sum (broadcast scalar)
    t = pl.program_id(1)
    tgt = tgt_ref[0, 0]                                            # (R, 128) int32
    row = lax.broadcasted_iota(jnp.int32, tgt.shape, 0)
    lane = lax.broadcasted_iota(jnp.int32, tgt.shape, 1)
    pix = (t * tile_rows + row) * 128 + lane                       # flat pixel index
    valid = pix < hw                                               # masks pad + ragged last block

    # Stable log-sum-exp over class planes: static unrolled loop, pure element-wise work.
    m = logits_ref[0, 0].astype(jnp.float32)
    for k in range(1, num_classes):
        m = jnp.maximum(m, logits_ref[0, k].astype(jnp.float32))
    s = jnp.zeros_like(m)
    tgt_logit = jnp.zeros_like(m)
    for k in range(num_classes):
        xk = logits_ref[0, k].astype(jnp.float32)
        s = s + jnp.exp(xk - m)
        tgt_logit = jnp.where(tgt == k, xk, tgt_logit)
    per_pixel = m + jnp.log(s) - tgt_logit                         # (R, 128)
    # NOTE: invalid (padded / out-of-bounds-block) pixels may carry garbage that became inf/nan
    # above; jnp.where is a select so it does NOT propagate them. Do not replace with mask*value.
    partial = jnp.sum(jnp.where(valid, per_pixel, 0.0))
    out_ref[...] = jnp.full(out_ref.shape, partial, jnp.float32)


@jax.jit
def cross_entropy_loss_nchw(logits_nchw, target_nhw):
    """PyTorch-equivalent nn.CrossEntropyLoss()(logits NCHW, targets NHW), mean reduction."""
    n, c, h, w = logits_nchw.shape
    hw = h * w
    lanes = 128
    hw_pad = pl.cdiv(hw, lanes) * lanes
    logits = logits_nchw.reshape(n, c, hw)                         # free reshape (contiguous NCHW)
    tgt = target_nhw.astype(jnp.int32).reshape(n, 1, hw)
    if hw_pad != hw:                                               # rare: HW not 128-aligned
        logits = jnp.pad(logits, ((0, 0), (0, 0), (0, hw_pad - hw)))
        tgt = jnp.pad(tgt, ((0, 0), (0, 0), (0, hw_pad - hw)))
    rows = hw_pad // lanes
    logits = logits.reshape(n, c, rows, lanes)                     # dense pixel vregs
    tgt = tgt.reshape(n, 1, rows, lanes)

    # Tile rows: up to 512 rows (= 64K pixels); cap double-buffered working set << VMEM limit.
    bytes_per_row = (c + 1) * lanes * 4
    budget = 6 * 1024 * 1024                                       # per pipeline buffer (~12 MiB x2)
    if rows >= 8:
        tile_rows = min(rows, 512, max(8, budget // bytes_per_row))
        tile_rows = max(8, (tile_rows // 8) * 8)
        # keep >= 4 grid blocks when possible (v7x megacore: 2 TensorCores)
        while n * pl.cdiv(rows, tile_rows) < 4 and tile_rows > 8:
            tile_rows = max(8, ((tile_rows // 2) // 8) * 8)
    else:
        tile_rows = rows                                           # tiny input: full-dim block
    nt = pl.cdiv(rows, tile_rows)

    partials = pl.pallas_call(
        functools.partial(_ce_kernel, hw=hw, tile_rows=tile_rows, num_classes=c),
        out_shape=jax.ShapeDtypeStruct((n, nt, 8, 128), jnp.float32),
        grid=(n, nt),
        in_specs=[
            pl.BlockSpec((1, c, tile_rows, lanes), lambda b, t: (b, 0, t, 0)),
            pl.BlockSpec((1, 1, tile_rows, lanes), lambda b, t: (b, 0, t, 0)),
        ],
        out_specs=pl.BlockSpec((1, 1, 8, 128), lambda b, t: (b, t, 0, 0)),
        compiler_params=pltpu.CompilerParams(
            dimension_semantics=("parallel", "parallel"),
            vmem_limit_bytes=32 * 1024 * 1024,
        ),
    )(logits, tgt)
    # TODO(synk): no ignore_index support (reference uses default CrossEntropyLoss); out-of-range
    # target values contribute lse instead of raising like PyTorch would.
    return jnp.sum(partials[:, :, 0, 0]) / (n * hw)


# ----------------------------------------------------------------------------
# Pallas kernel 2: silog depth loss partial sums (the 'depth' branch)
# ----------------------------------------------------------------------------
def _silog_kernel(pred_ref, gt_ref, out_ref, *, total, tile_rows):
    # pred_ref / gt_ref: (TILE_ROWS, 128); out_ref: (1, 8, 128)
    # lanes 0,1,2 carry (sum_d, sum_d2, valid_count) for this block.
    t = pl.program_id(0)
    pred = pred_ref[...].astype(jnp.float32)
    gt = gt_ref[...].astype(jnp.float32)
    row = lax.broadcasted_iota(jnp.int32, pred.shape, 0)
    lane = lax.broadcasted_iota(jnp.int32, pred.shape, 1)
    elem = (t * tile_rows + row) * 128 + lane
    valid = (elem < total) & (gt > 0.1)                            # flat-tail mask + depth mask
    # NOTE: where() is a select — padded/garbage elements never poison the sums.
    safe_pred = jnp.where(valid, pred, 1.0)
    safe_gt = jnp.where(valid, gt, 1.0)
    d = jnp.where(valid, jnp.log(safe_pred / safe_gt), 0.0)        # single log per element
    sum_d = jnp.sum(d)
    sum_d2 = jnp.sum(d * d)
    cnt = jnp.sum(valid.astype(jnp.float32))
    lane_o = lax.broadcasted_iota(jnp.int32, out_ref.shape, 2)
    out_ref[...] = jnp.where(lane_o == 0, sum_d,
                   jnp.where(lane_o == 1, sum_d2,
                   jnp.where(lane_o == 2, cnt, 0.0)))


@functools.partial(jax.jit, static_argnames=("variance_focus",))
def silog_loss(depth_est, depth_gt, variance_focus=0.85):
    """silog loss over mask = (gt > 0.1); matches BTS silog_loss.forward semantics."""
    lanes = 128
    total = depth_est.size                                         # static under jit
    pred = depth_est.reshape(-1)
    gt = depth_gt.reshape(-1)
    total_pad = pl.cdiv(total, lanes) * lanes
    if total_pad != total:                                         # rare: not 128-aligned
        pred = jnp.pad(pred, (0, total_pad - total))
        gt = jnp.pad(gt, (0, total_pad - total))
    rows = total_pad // lanes
    pred2d = pred.reshape(rows, lanes)
    gt2d = gt.reshape(rows, lanes)

    # Tile: ~4 MiB per input per buffer (2 inputs x 2 pipeline buffers = 16 MiB working set).
    bytes_per_row = lanes * 4
    budget = 4 * 1024 * 1024
    if rows >= 8:
        tile_rows = min(rows, max(8, (budget // bytes_per_row) // 8 * 8))
        tile_rows = max(8, (tile_rows // 8) * 8)
        # keep >= 2 grid blocks when possible (v7x megacore)
        while pl.cdiv(rows, tile_rows) < 2 and tile_rows > 8:
            tile_rows = max(8, ((tile_rows // 2) // 8) * 8)
    else:
        tile_rows = rows                                           # tiny input: full-dim block
    nt = pl.cdiv(rows, tile_rows)

    partials = pl.pallas_call(
        functools.partial(_silog_kernel, total=total, tile_rows=tile_rows),
        out_shape=jax.ShapeDtypeStruct((nt, 8, 128), jnp.float32),
        grid=(nt,),
        in_specs=[
            pl.BlockSpec((tile_rows, lanes), lambda t: (t, 0)),
            pl.BlockSpec((tile_rows, lanes), lambda t: (t, 0)),
        ],
        out_specs=pl.BlockSpec((1, 8, 128), lambda t: (t, 0, 0)),
        compiler_params=pltpu.CompilerParams(
            dimension_semantics=("parallel",),
            vmem_limit_bytes=32 * 1024 * 1024,
        ),
    )(pred2d, gt2d)
    tot = jnp.sum(partials[:, 0, :], axis=0)                       # (128,), lanes 0/1/2 meaningful
    sum_d, sum_d2, cnt = tot[0], tot[1], tot[2]
    # TODO(synk): reference yields NaN (then raises) on an all-masked batch; we guard cnt >= 1.
    cnt = jnp.maximum(cnt, 1.0)
    mean_d = sum_d / cnt
    var = sum_d2 / cnt - variance_focus * mean_d * mean_d
    return jnp.sqrt(jnp.maximum(var, 0.0)) * 10.0                  # clamp fp-rounding negatives


# ----------------------------------------------------------------------------
# MultiHeadLoss equivalent (forward / _forward_impl)
# ----------------------------------------------------------------------------
class MultiHeadLoss:
    def __init__(self, lambdas=None, num_losses=4):
        if not lambdas:
            lambdas = [1.0 for _ in range(num_losses + 3)]
        assert all(lam >= 0.0 for lam in lambdas)
        self.lambdas = lambdas

    def __call__(self, predictions, targets, shapes, model, imgs, task):
        return self._forward_impl(predictions, targets, shapes, model, imgs, task)

    def _forward_impl(self, predictions, targets, shapes, model, imgs, task):
        det_all_loss = jnp.float32(0.0)
        da_seg_loss = jnp.float32(0.0)
        depth_loss = jnp.float32(0.0)
        ll_tversky_loss = jnp.float32(0.0)
        task = task[0] if isinstance(task, list) else task

        if task == 'detect':
            # TODO(synk): Det_loss is an external, user-supplied nn.Module not defined in the
            # reference file; no Pallas equivalent can be derived. Contributes 0 here.
            det_all_loss = det_all_loss * self.lambdas[1]
        if task == 'seg':
            da_seg_loss = cross_entropy_loss_nchw(predictions[1], targets[1])
        if task == 'depth':
            _lpg8x8, _lpg4x4, _lpg2x2, _reduc1x1, depth_est = predictions[2]
            depth_loss = silog_loss(depth_est, targets[2], variance_focus=0.85)
            # TODO(synk): the reference's torch.isfinite check forces a host sync; callers that
            # need it should check on the returned device scalar instead.

        loss = det_all_loss + da_seg_loss + depth_loss
        # Return device scalars (no float()/.item() host syncs) per performance feedback.
        head_losses = (det_all_loss, da_seg_loss, depth_loss, ll_tversky_loss, loss)
        return loss, head_losses


# ----------------------------------------------------------------------------
# Demo / smoke test
# ----------------------------------------------------------------------------
if __name__ == "__main__":
    key = jax.random.PRNGKey(0)
    k1, k2, k3, k4 = jax.random.split(key, 4)

    N, C, H, W = 2, 4, 16, 16

    # 'seg' task: drivable-area seg logits (NCHW) + integer class map (NHW)
    seg_logits = jax.random.normal(k1, (N, C, H, W), dtype=jnp.float32)
    seg_target = jax.random.randint(k2, (N, H, W), 0, C, dtype=jnp.int32)

    # 'depth' task: depth_est and gt depth (N,1,H,W); some gt pixels <= 0.1 are masked out
    depth_est = jax.random.uniform(k3, (N, 1, H, W), jnp.float32, minval=0.5, maxval=10.0)
    depth_gt = jax.random.uniform(k4, (N, 1, H, W), jnp.float32, minval=0.0, maxval=10.0)

    # predictions layout mirrors the PyTorch module:
    # [det_heads, da_seg_head, (lpg8x8, lpg4x4, lpg2x2, reduc1x1, depth_est)]
    predictions = [None, seg_logits, (None, None, None, None, depth_est)]
    targets = [None, seg_target, depth_gt]

    mh_loss = MultiHeadLoss(lambdas=None, num_losses=4)

    total_seg, losses_seg = mh_loss(predictions, targets, shapes=None, model=None,
                                    imgs=None, task='seg')
    total_depth, losses_depth = mh_loss(predictions, targets, shapes=None, model=None,
                                        imgs=None, task=['depth'])

    jax.block_until_ready(total_seg)
    jax.block_until_ready(total_depth)

    # Lightweight sanity checks against plain-JAX references
    ref_ce = jnp.mean(
        jax.nn.logsumexp(jnp.transpose(seg_logits, (0, 2, 3, 1)), axis=-1)
        - jnp.take_along_axis(jnp.transpose(seg_logits, (0, 2, 3, 1)),
                              seg_target[..., None], axis=-1)[..., 0]
    )
    mask = depth_gt > 0.1
    d = jnp.where(mask, jnp.log(jnp.where(mask, depth_est, 1.0))
                  - jnp.log(jnp.where(mask, depth_gt, 1.0)), 0.0)
    cnt = jnp.sum(mask)
    ref_silog = jnp.sqrt(jnp.sum(d * d) / cnt - 0.85 * (jnp.sum(d) / cnt) ** 2) * 10.0

    assert jnp.allclose(total_seg, ref_ce, rtol=1e-5, atol=1e-5), (total_seg, ref_ce)
    assert jnp.allclose(total_depth, ref_silog, rtol=1e-5, atol=1e-5), (total_depth, ref_silog)
    assert bool(jnp.isfinite(total_depth)), "Invalid depth_loss detected"

    print("KERNEL_OK")
</pallas_src>

<mosaic_0001>
module attributes {stable_mosaic.version = 11 : i64} {
  func.func @_ce_kernel(%arg0: i32, %arg1: i32, %arg2: memref<1x4x2x128xf32, #tpu.memory_space<vmem>>, %arg3: memref<1x1x2x128xi32, #tpu.memory_space<vmem>>, %arg4: memref<1x1x8x128xf32, #tpu.memory_space<vmem>>) attributes {dimension_semantics = [#tpu.dimension_semantics<parallel>, #tpu.dimension_semantics<parallel>], iteration_bounds = array<i64: 2, 1>, scalar_prefetch = 0 : i64, scratch_operands = 0 : i64, tpu.core_type = #tpu.core_type<tc>, window_params = [{transform_indices = @transform_0, window_bounds = array<i64: 1, 4, 2, 128>}, {transform_indices = @transform_1, window_bounds = array<i64: 1, 1, 2, 128>}, {transform_indices = @transform_2, window_bounds = array<i64: 1, 1, 8, 128>}]} {
    %c0 = arith.constant 0 : index
    %c0_0 = arith.constant 0 : index
    %c0_1 = arith.constant 0 : index
    %c0_2 = arith.constant 0 : index
    %0 = vector.load %arg3[%c0, %c0_0, %c0_1, %c0_2] : memref<1x1x2x128xi32, #tpu.memory_space<vmem>>, vector<1x1x2x128xi32>
    %1 = vector.shape_cast %0 : vector<1x1x2x128xi32> to vector<2x128xi32>
    %2 = tpu.iota {dimensions = array<i32: 0>} : vector<2x128xi32>
    %3 = tpu.iota {dimensions = array<i32: 1>} : vector<2x128xi32>
    %c2_i32 = arith.constant 2 : i32
    %4 = arith.muli %arg1, %c2_i32 : i32
    %5 = vector.broadcast %4 : i32 to vector<2x128xi32>
    %6 = arith.addi %5, %2 : vector<2x128xi32>
    %c128_i32 = arith.constant 128 : i32
    %7 = vector.broadcast %c128_i32 : i32 to vector<2x128xi32>
    %8 = arith.muli %6, %7 : vector<2x128xi32>
    %9 = arith.addi %8, %3 : vector<2x128xi32>
    %c256_i32 = arith.constant 256 : i32
    %10 = vector.broadcast %c256_i32 : i32 to vector<2x128xi32>
    %11 = arith.cmpi slt, %9, %10 : vector<2x128xi32>
    %c0_3 = arith.constant 0 : index
    %c0_4 = arith.constant 0 : index
    %c0_5 = arith.constant 0 : index
    %c0_6 = arith.constant 0 : index
    %12 = vector.load %arg2[%c0_3, %c0_4, %c0_5, %c0_6] : memref<1x4x2x128xf32, #tpu.memory_space<vmem>>, vector<1x1x2x128xf32>
    %13 = vector.shape_cast %12 : vector<1x1x2x128xf32> to vector<2x128xf32>
    %c0_7 = arith.constant 0 : index
    %c1 = arith.constant 1 : index
    %c0_8 = arith.constant 0 : index
    %c0_9 = arith.constant 0 : index
    %14 = vector.load %arg2[%c0_7, %c1, %c0_8, %c0_9] : memref<1x4x2x128xf32, #tpu.memory_space<vmem>>, vector<1x1x2x128xf32>
    %15 = vector.shape_cast %14 : vector<1x1x2x128xf32> to vector<2x128xf32>
    %16 = arith.maximumf %13, %15 : vector<2x128xf32>
    %c0_10 = arith.constant 0 : index
    %c2 = arith.constant 2 : index
    %c0_11 = arith.constant 0 : index
    %c0_12 = arith.constant 0 : index
    %17 = vector.load %arg2[%c0_10, %c2, %c0_11, %c0_12] : memref<1x4x2x128xf32, #tpu.memory_space<vmem>>, vector<1x1x2x128xf32>
    %18 = vector.shape_cast %17 : vector<1x1x2x128xf32> to vector<2x128xf32>
    %19 = arith.maximumf %16, %18 : vector<2x128xf32>
    %c0_13 = arith.constant 0 : index
    %c3 = arith.constant 3 : index
    %c0_14 = arith.constant 0 : index
    %c0_15 = arith.constant 0 : index
    %20 = vector.load %arg2[%c0_13, %c3, %c0_14, %c0_15] : memref<1x4x2x128xf32, #tpu.memory_space<vmem>>, vector<1x1x2x128xf32>
    %21 = vector.shape_cast %20 : vector<1x1x2x128xf32> to vector<2x128xf32>
    %22 = arith.maximumf %19, %21 : vector<2x128xf32>
    %cst = arith.constant 0.000000e+00 : f32
    %23 = vector.broadcast %cst : f32 to vector<2x128xf32>
    %cst_16 = arith.constant 0.000000e+00 : f32
    %24 = vector.broadcast %cst_16 : f32 to vector<2x128xf32>
    %c0_17 = arith.constant 0 : index
    %c0_18 = arith.constant 0 : index
    %c0_19 = arith.constant 0 : index
    %c0_20 = arith.constant 0 : index
    %25 = vector.load %arg2[%c0_17, %c0_18, %c0_19, %c0_20] : memref<1x4x2x128xf32, #tpu.memory_space<vmem>>, vector<1x1x2x128xf32>
    %26 = vector.shape_cast %25 : vector<1x1x2x128xf32> to vector<2x128xf32>
    %27 = arith.subf %26, %22 : vector<2x128xf32>
    %28 = math.exp %27 : vector<2x128xf32>
    %29 = arith.addf %23, %28 : vector<2x128xf32>
    %c0_i32 = arith.constant 0 : i32
    %30 = vector.broadcast %c0_i32 : i32 to vector<2x128xi32>
    %31 = arith.cmpi eq, %1, %30 : vector<2x128xi32>
    %32 = arith.select %31, %26, %24 : vector<2x128xi1>, vector<2x128xf32>
    %c0_21 = arith.constant 0 : index
    %c1_22 = arith.constant 1 : index
    %c0_23 = arith.constant 0 : index
    %c0_24 = arith.constant 0 : index
    %33 = vector.load %arg2[%c0_21, %c1_22, %c0_23, %c0_24] : memref<1x4x2x128xf32, #tpu.memory_space<vmem>>, vector<1x1x2x128xf32>
    %34 = vector.shape_cast %33 : vector<1x1x2x128xf32> to vector<2x128xf32>
    %35 = arith.subf %34, %22 : vector<2x128xf32>
    %36 = math.exp %35 : vector<2x128xf32>
    %37 = arith.addf %29, %36 : vector<2x128xf32>
    %c1_i32 = arith.constant 1 : i32
    %38 = vector.broadcast %c1_i32 : i32 to vector<2x128xi32>
    %39 = arith.cmpi eq, %1, %38 : vector<2x128xi32>
    %40 = arith.select %39, %34, %32 : vector<2x128xi1>, vector<2x128xf32>
    %c0_25 = arith.constant 0 : index
    %c2_26 = arith.constant 2 : index
    %c0_27 = arith.constant 0 : index
    %c0_28 = arith.constant 0 : index
    %41 = vector.load %arg2[%c0_25, %c2_26, %c0_27, %c0_28] : memref<1x4x2x128xf32, #tpu.memory_space<vmem>>, vector<1x1x2x128xf32>
    %42 = vector.shape_cast %41 : vector<1x1x2x128xf32> to vector<2x128xf32>
    %43 = arith.subf %42, %22 : vector<2x128xf32>
    %44 = math.exp %43 : vector<2x128xf32>
    %45 = arith.addf %37, %44 : vector<2x128xf32>
    %c2_i32_29 = arith.constant 2 : i32
    %46 = vector.broadcast %c2_i32_29 : i32 to vector<2x128xi32>
    %47 = arith.cmpi eq, %1, %46 : vector<2x128xi32>
    %48 = arith.select %47, %42, %40 : vector<2x128xi1>, vector<2x128xf32>
    %c0_30 = arith.constant 0 : index
    %c3_31 = arith.constant 3 : index
    %c0_32 = arith.constant 0 : index
    %c0_33 = arith.constant 0 : index
    %49 = vector.load %arg2[%c0_30, %c3_31, %c0_32, %c0_33] : memref<1x4x2x128xf32, #tpu.memory_space<vmem>>, vector<1x1x2x128xf32>
    %50 = vector.shape_cast %49 : vector<1x1x2x128xf32> to vector<2x128xf32>
    %51 = arith.subf %50, %22 : vector<2x128xf32>
    %52 = math.exp %51 : vector<2x128xf32>
    %53 = arith.addf %45, %52 : vector<2x128xf32>
    %c3_i32 = arith.constant 3 : i32
    %54 = vector.broadcast %c3_i32 : i32 to vector<2x128xi32>
    %55 = arith.cmpi eq, %1, %54 : vector<2x128xi32>
    %56 = arith.select %55, %50, %48 : vector<2x128xi1>, vector<2x128xf32>
    %57 = math.log %53 : vector<2x128xf32>
    %58 = arith.addf %22, %57 : vector<2x128xf32>
    %59 = arith.subf %58, %56 : vector<2x128xf32>
    %cst_34 = arith.constant 0.000000e+00 : f32
    %60 = vector.broadcast %cst_34 : f32 to vector<2x128xf32>
    %61 = arith.select %11, %59, %60 : vector<2x128xi1>, vector<2x128xf32>
    %62 = vector.shape_cast %61 : vector<2x128xf32> to vector<1x2x128xf32>
    %cst_35 = arith.constant dense<0.000000e+00> : vector<1xf32>
    %63 = vector.multi_reduction <add>, %62, %cst_35 [1, 2] : vector<1x2x128xf32> to vector<1xf32>
    %64 = vector.shape_cast %63 : vector<1xf32> to vector<1x1x1xf32>
    %65 = vector.extract %64[0, 0, 0] : f32 from vector<1x1x1xf32>
    %66 = vector.broadcast %65 : f32 to vector<1x1x8x128xf32>
    %c0_36 = arith.constant 0 : index
    %c0_37 = arith.constant 0 : index
    %c0_38 = arith.constant 0 : index
    %c0_39 = arith.constant 0 : index
    %67 = vector.load %arg4[%c0_36, %c0_37, %c0_38, %c0_39] : memref<1x1x8x128xf32, #tpu.memory_space<vmem>>, vector<1x1x8x128xf32>
    tpu.vector_store %arg4[%c0_36, %c0_37, %c0_38, %c0_39], %66 {strides = array<i32>} : memref<1x1x8x128xf32, #tpu.memory_space<vmem>>, vector<1x1x8x128xf32>,
    return
  }
  func.func @transform_0(%arg0: i32, %arg1: i32) -> (i32, i32, i32, i32) {
    %c0_i32 = arith.constant 0 : i32
    %c0_i32_0 = arith.constant 0 : i32
    %c0_i32_1 = arith.constant 0 : i32
    return %arg0, %c0_i32, %arg1, %c0_i32_0 : i32, i32, i32, i32
  }
  func.func @transform_1(%arg0: i32, %arg1: i32) -> (i32, i32, i32, i32) {
    %c0_i32 = arith.constant 0 : i32
    %c0_i32_0 = arith.constant 0 : i32
    %c0_i32_1 = arith.constant 0 : i32
    return %arg0, %c0_i32, %arg1, %c0_i32_0 : i32, i32, i32, i32
  }
  func.func @transform_2(%arg0: i32, %arg1: i32) -> (i32, i32, i32, i32) {
    %c0_i32 = arith.constant 0 : i32
    %c0_i32_0 = arith.constant 0 : i32
    %c0_i32_1 = arith.constant 0 : i32
    return %arg0, %arg1, %c0_i32, %c0_i32_0 : i32, i32, i32, i32
  }
}

</mosaic_0001>

<llo_original>
// kernel: cross_entropy_loss_nchw.1
$region0: #{cross_entropy_loss_nchw.1}
  #allocation0 [shape = 'u32[]', space=smem, size = 0x4, offset = 0x4, fixed_abs, tag = 'smem constant byte address 0x4 - core index']
  #allocation1 [shape = 'u32[144,128]{1,0:T(1,128)}', space=vmem, size = 0x12000, scoped, tag = 'internal scratch']
  %s0 = inlined_call_operand.vmem [shape: f32[2,4,2,128], index: 0, kind: input, shape index: {}]
  %s1 = inlined_call_operand.vmem [shape: s32[2,1,2,128], index: 1, kind: input, shape index: {}]
  %s2 = inlined_call_operand.vmem [shape: f32[2,1,8,128], index: 2, kind: output, shape index: {}]
  %s3 = sld [smem:[#allocation0]]
  $region41: #{cross_entropy_loss_nchw.1} parent=0
    _
  %s5 = ssub.s32 1, %s3
  %s6 = scalar_select 0, %s5, %s3
  loop: start=0, step=1, limit=4
  $region2: #{cross_entropy_loss_nchw.1} parent=0 // loop_pre_header
    _
  $region3: #{cross_entropy_loss_nchw.1} parent=0 // loop_header
    %s8 = sphi 0, %s12
    %p9 = scmp.ge.s32.totalorder %s8, 4
    %s15 = sphi 0, %s27
    %s16 = sphi 0, %s23
    %s17 = sphi 0, %s15
    %s18 = sphi 0, %s16
    %s19 = sphi 0, %s17
    %s20 = sphi 0, %s18
    %s32 = sphi 0, %s34
    %s35 = sphi 0, %s32
    %s36 = sphi 0, %s35
    %s52 = sphi 0, %s36
    %s60 = sphi 0, %s62
    %s63 = sphi 0, %s60
    %s64 = sphi 0, %s63
    %s80 = sphi 0, %s64
    %s88 = sphi 0, %s90
    %s91 = sphi 0, %s88
    %s92 = sphi 0, %s91
    %s108 = sphi 0, %s92
  $region4: #{cross_entropy_loss_nchw.1} parent=0 // loop_header_branch
    %11 = sbr.rel (%p9) target = $region8
  $region5: #{cross_entropy_loss_nchw.1} parent=0 // loop_body
    %s13 = ssub.s32 %s8, 1
    %s14 = ssub.s32 %s8, 2
    %s21 = sadd.s32 1, %s16
    %p22 = scmp.ge.s32.totalorder %s21, 1
    %s23 = scalar_select %p22, 0, %s21
    %s24 = sadd.s32 1, %s15
    %s25 = scalar_select %p22, %s24, %s15
    %p26 = scmp.ge.s32.totalorder %s25, 2
    %s27 = scalar_select %p26, 0, %s25
    %s28 = ssub.s32 %s15, %s27
    %s29 = ssub.s32 %s16, %s23
    %s30 = sor.u32 %s28, %s29
    %p31 = scmp.eq.s32.totalorder %s30, 0
    %s33 = sadd.s32 %s32, 1
    %s34 = scalar_select %p31, %s32, %s33
    %p37 = pneg %p31
    %p38 = scmp.eq.s32.totalorder %s8, 1
    %p39 = por %p37, %p38
    %p40 = scmp.ne.s32.totalorder %s32, %s35
    %p41 = scmp.eq.s32.totalorder %s8, 0
    %p42 = por %p40, %p41
    %p43 = scmp.ne.s32.totalorder %s32, %s35
    %p44 = scmp.eq.s32.totalorder %s13, 1
    %p45 = por %p43, %p44
    %p46 = scmp.ne.s32.totalorder %s35, %s36
    %p47 = scmp.eq.s32.totalorder %s13, 0
    %p48 = por %p46, %p47
    %p49 = scmp.ne.s32.totalorder %s35, %s36
    %p50 = scmp.eq.s32.totalorder %s14, 1
    %p51 = por %p49, %p50
    %p53 = scmp.ne.s32.totalorder %s36, %s52
    %p54 = scmp.eq.s32.totalorder %s14, 0
    %p55 = por %p53, %p54
    %s56 = ssub.s32 %s15, %s27
    %s57 = ssub.s32 %s16, %s23
    %s58 = sor.u32 %s56, %s57
    %p59 = scmp.eq.s32.totalorder %s58, 0
    %s61 = sadd.s32 %s60, 1
    %s62 = scalar_select %p59, %s60, %s61
    %p65 = pneg %p59
    %p66 = scmp.eq.s32.totalorder %s8, 1
    %p67 = por %p65, %p66
    %p68 = scmp.ne.s32.totalorder %s60, %s63
    %p69 = scmp.eq.s32.totalorder %s8, 0
    %p70 = por %p68, %p69
    %p71 = scmp.ne.s32.totalorder %s60, %s63
    %p72 = scmp.eq.s32.totalorder %s13, 1
    %p73 = por %p71, %p72
    %p74 = scmp.ne.s32.totalorder %s63, %s64
    %p75 = scmp.eq.s32.totalorder %s13, 0
    %p76 = por %p74, %p75
    %p77 = scmp.ne.s32.totalorder %s63, %s64
    %p78 = scmp.eq.s32.totalorder %s14, 1
    %p79 = por %p77, %p78
    %p81 = scmp.ne.s32.totalorder %s64, %s80
    %p82 = scmp.eq.s32.totalorder %s14, 0
    %p83 = por %p81, %p82
    %s84 = ssub.s32 %s15, %s27
    %s85 = ssub.s32 %s16, %s23
    %s86 = sor.u32 %s84, %s85
    %p87 = scmp.eq.s32.totalorder %s86, 0
    %s89 = sadd.s32 %s88, 1
    %s90 = scalar_select %p87, %s88, %s89
    %p93 = pneg %p87
    %p94 = scmp.eq.s32.totalorder %s8, 1
    %p95 = por %p93, %p94
    %p96 = scmp.ne.s32.totalorder %s88, %s91
    %p97 = scmp.eq.s32.totalorder %s8, 0
    %p98 = por %p96, %p97
    %p99 = scmp.ne.s32.totalorder %s88, %s91
    %p100 = scmp.eq.s32.totalorder %s13, 1
    %p101 = por %p99, %p100
    %p102 = scmp.ne.s32.totalorder %s91, %s92
    %p103 = scmp.eq.s32.totalorder %s13, 0
    %p104 = por %p102, %p103
    %p105 = scmp.ne.s32.totalorder %s91, %s92
    %p106 = scmp.eq.s32.totalorder %s14, 1
    %p107 = por %p105, %p106
    %p109 = scmp.ne.s32.totalorder %s92, %s108
    %p110 = scmp.eq.s32.totalorder %s14, 0
    %p111 = por %p109, %p110
    %p112 = scmp.le.s32.totalorder 1, %s8
    %p113 = scmp.lt.s32.totalorder %s8, 3
    %p114 = pnand %p112, %p113
    %p115 = pneg %p114
    // Predicated region
    $region9: #{cross_entropy_loss_nchw.1} parent=5 // pred_check
      _
    $region10: #{cross_entropy_loss_nchw.1} parent=5 // pred_check_branch
      %117 = sbr.rel (%p114) target = $region12
    $region11: #{cross_entropy_loss_nchw.1} parent=5 // pred_region
      %s118 = ssub.s32 %s8, 1
    $region12: #{cross_entropy_loss_nchw.1} parent=5 // pred_fallthru
      _
    %p119 = scmp.lt.s32.totalorder %s8, 2
    // Predicated region
    $region13: #{cross_entropy_loss_nchw.1} parent=5 // pred_check
      %p120 = pneg %p119
    $region14: #{cross_entropy_loss_nchw.1} parent=5 // pred_check_branch
      %122 = sbr.rel (%p120) target = $region16
    $region15: #{cross_entropy_loss_nchw.1} parent=5 // pred_region
      // Predicated region
      $region17: #{cross_entropy_loss_nchw.1} parent=15 // pred_check
        %p123 = pneg %p42
      $region18: #{cross_entropy_loss_nchw.1} parent=15 // pred_check_branch
        %125 = sbr.rel (%p123) target = $region20
      $region19: #{cross_entropy_loss_nchw.1} parent=15 // pred_region
        %p126 = scmp.lt.s32.totalorder %s15, 1
        %s127 = scalar_select %p126, %s15, 1
        %p128 = scmp.lt.s32.totalorder %s16, 0
        %s129 = scalar_select %p128, %s16, 0
        %s130 = smul.addr %s127, 4
        %s131 = sadd.s32 %s129, %s130
        %s132 = smul.addr %s131, 2
        %s133 = scalar_lea.vmem %s0, %s132
      $region20: #{cross_entropy_loss_nchw.1} parent=15 // pred_fallthru
        _
      // Predicated region
      $region21: #{cross_entropy_loss_nchw.1} parent=15 // pred_check
        %p134 = pneg %p70
      $region22: #{cross_entropy_loss_nchw.1} parent=15 // pred_check_branch
        %136 = sbr.rel (%p134) target = $region24
      $region23: #{cross_entropy_loss_nchw.1} parent=15 // pred_region
        %p137 = scmp.lt.s32.totalorder %s15, 1
        %s138 = scalar_select %p137, %s15, 1
        %p139 = scmp.lt.s32.totalorder %s16, 0
        %s140 = scalar_select %p139, %s16, 0
        %s141 = sadd.s32 %s140, %s138
        %s142 = smul.addr %s141, 2
        %s143 = scalar_lea.vmem %s1, %s142
      $region24: #{cross_entropy_loss_nchw.1} parent=15 // pred_fallthru
        _
    $region16: #{cross_entropy_loss_nchw.1} parent=5 // pred_fallthru
      _
    %p144 = scmp.le.s32.totalorder 1, %s8
    %p145 = scmp.lt.s32.totalorder %s8, 3
    %p146 = pnand %p144, %p145
    %p147 = pneg %p146
    // Predicated region
    $region25: #{cross_entropy_loss_nchw.1} parent=5 // pred_check
      _
    $region26: #{cross_entropy_loss_nchw.1} parent=5 // pred_check_branch
      %149 = sbr.rel (%p146) target = $region28
    $region27: #{cross_entropy_loss_nchw.1} parent=5 // pred_region
      %s150 = ssub.s32 %s8, 1
      %p151 = scmp.lt.s32.totalorder %s17, 1
      %s152 = scalar_select %p151, %s17, 1
      %p153 = scmp.lt.s32.totalorder %s18, 0
      %s154 = scalar_select %p153, %s18, 0
      %s155 = smul.addr %s152, 4
      %s156 = sadd.s32 %s154, %s155
      %s157 = smul.addr %s156, 2
      %s158 = scalar_lea.vmem %s0, %s157
      %p159 = pneg %p48
      %p160 = pneg %p45
      %p161 = scmp.lt.s32.totalorder %s17, 1
      %s162 = scalar_select %p161, %s17, 1
      %p163 = scmp.lt.s32.totalorder %s18, 0
      %s164 = scalar_select %p163, %s18, 0
      %s165 = sadd.s32 %s164, %s162
      %s166 = smul.addr %s165, 2
      %s167 = scalar_lea.vmem %s1, %s166
      %p168 = pneg %p76
      %p169 = pneg %p73
      %p170 = pneg %p104
      %p171 = pneg %p101
      %p172 = scmp.lt.s32.totalorder %s17, 1
      %s173 = scalar_select %p172, %s17, 1
      %p174 = scmp.lt.s32.totalorder %s18, 0
      %s175 = scalar_select %p174, %s18, 0
      %s176 = sadd.s32 %s175, %s173
      %s177 = smul.addr %s176, 8
      %s178 = scalar_lea.vmem %s2, %s177
      %p179 = scmp.lt.s32.totalorder %s17, 1
      %s180 = scalar_select %p179, %s17, 1
      %p181 = scmp.lt.s32.totalorder %s18, 0
      %s182 = scalar_select %p181, %s18, 0
      %s183 = smul.addr %s180, 4
      %s184 = sadd.s32 %s182, %s183
      %s185 = smul.addr %s184, 2
      %s186 = scalar_lea.vmem %s0, %s185
      %p187 = scmp.lt.s32.totalorder %s17, 1
      %s188 = scalar_select %p187, %s17, 1
      %p189 = scmp.lt.s32.totalorder %s18, 0
      %s190 = scalar_select %p189, %s18, 0
      %s191 = sadd.s32 %s190, %s188
      %s192 = smul.addr %s191, 2
      %s193 = scalar_lea.vmem %s1, %s192
      %p194 = scmp.lt.s32.totalorder %s17, 1
      %s195 = scalar_select %p194, %s17, 1
      %p196 = scmp.lt.s32.totalorder %s18, 0
      %s197 = scalar_select %p196, %s18, 0
      %s198 = sadd.s32 %s197, %s195
      %s199 = smul.addr %s198, 8
      %s200 = scalar_lea.vmem %s2, %s199
      %v201 = vld [vmem:[%s193] sm:$0x3]
      %v202 = vlaneseq
      %v203 = vshrl.u32 %v202, 7
      %v204 = vlaneseq
      %v205 = vand.u32 %v204, 127
      %s206 = smul.u32 %s18, 2
      %v207 = vstv %s206
      %v208 = vadd.s32 %v207, %v203
      %v209 = vmul.u32 %v208, 128
      %v210 = vadd.s32 %v209, %v205
      %vm211 = vcmp.lt.s32.totalorder %v210, 256
      %v212 = vld [vmem:[%s186] sm:$0x3]
      %s213 = scalar_lea.vmem %s186, 2
      %v214 = vld [vmem:[%s213] sm:$0x3]
      %v215 = vmax.f32 %v212, %v214
      %s216 = scalar_lea.vmem %s186, 4
      %v217 = vld [vmem:[%s216] sm:$0x3]
      %v218 = vmax.f32 %v215, %v217
      %s219 = scalar_lea.vmem %s186, 6
      %v220 = vld [vmem:[%s219] sm:$0x3]
      %v221 = vmax.f32 %v218, %v220
      %v222 = vsub.f32 %v212, %v221
      %v223 = vmul.f32 %v222, 1.442695
      %v224 = vpow.pop %v223
      %v225 = vadd.f32 %v224, 0.0
      %vm226 = vcmp.eq.s32.totalorder %v201, 0
      %v227 = vsel %vm226, %v212, 0.0
      %v228 = vsub.f32 %v214, %v221
      %v229 = vmul.f32 %v228, 1.442695
      %v230 = vpow.pop %v229
      %v231 = vadd.f32 %v225, %v230
      %vm232 = vcmp.eq.s32.totalorder %v201, 1
      %v233 = vsel %vm232, %v214, %v227
      %v234 = vsub.f32 %v217, %v221
      %v235 = vmul.f32 %v234, 1.442695
      %v236 = vpow.pop %v235
      %v237 = vadd.f32 %v231, %v236
      %vm238 = vcmp.eq.s32.totalorder %v201, 2
      %v239 = vsel %vm238, %v217, %v233
      %v240 = vsub.f32 %v220, %v221
      %v241 = vmul.f32 %v240, 1.442695
      %v242 = vpow.pop %v241
      %v243 = vadd.f32 %v237, %v242
      %vm244 = vcmp.eq.s32.totalorder %v201, 3
      %v245 = vsel %vm244, %v220, %v239
      %v246 = vlog2.pop %v243
      %v247 = vmul.f32 %v246, 0.6931472
      %v248 = vadd.f32 %v221, %v247
      %v249 = vsub.f32 %v248, %v245
      %v250 = vsel %vm211, %v249, 0.0
      %vm251 = vcmask 1041408
      %v252 = vsel %vm251, %v250, 0.0
      %253 = vadd.xlane.f32.xlu0 %v252
      %v254 = vpop.xlane.xlu0 %253
      %v255 = vrot.slane %v254, 4
      %v256 = vadd.f32 %v254, %v255
      %v257 = vrot.slane %v256, 2
      %v258 = vadd.f32 %v256, %v257
      %v259 = vrot.slane %v258, 1
      %v260 = vadd.f32 %v258, %v259
      %s261 = vtos %v260
      %v262 = vstv %s261
      %263 = vst [vmem:[%s200] sm:$0xff] %v262
      %p264 = scmp.lt.s32.totalorder %s17, 1
      %s265 = scalar_select %p264, %s17, 1
      %p266 = scmp.lt.s32.totalorder %s18, 0
      %s267 = scalar_select %p266, %s18, 0
      %s268 = sadd.s32 %s267, %s265
      %s269 = smul.addr %s268, 8
      %s270 = scalar_lea.vmem %s2, %s269
      // Predicated region
      $region29: #{cross_entropy_loss_nchw.1} parent=27 // pred_check
        %p271 = pneg %p101
      $region30: #{cross_entropy_loss_nchw.1} parent=27 // pred_check_branch
        %273 = sbr.rel (%p271) target = $region32
      $region31: #{cross_entropy_loss_nchw.1} parent=27 // pred_region
        _
      $region32: #{cross_entropy_loss_nchw.1} parent=27 // pred_fallthru
        _
    $region28: #{cross_entropy_loss_nchw.1} parent=5 // pred_fallthru
      _
    %p274 = scmp.le.s32.totalorder 2, %s8
    // Predicated region
    $region33: #{cross_entropy_loss_nchw.1} parent=5 // pred_check
      %p275 = pneg %p274
    $region34: #{cross_entropy_loss_nchw.1} parent=5 // pred_check_branch
      %277 = sbr.rel (%p275) target = $region36
    $region35: #{cross_entropy_loss_nchw.1} parent=5 // pred_region
      %s278 = ssub.s32 %s8, 2
      // Predicated region
      $region37: #{cross_entropy_loss_nchw.1} parent=35 // pred_check
        %p279 = pneg %p107
      $region38: #{cross_entropy_loss_nchw.1} parent=35 // pred_check_branch
        %281 = sbr.rel (%p279) target = $region40
      $region39: #{cross_entropy_loss_nchw.1} parent=35 // pred_region
        %p282 = scmp.lt.s32.totalorder %s19, 1
        %s283 = scalar_select %p282, %s19, 1
        %p284 = scmp.lt.s32.totalorder %s20, 0
        %s285 = scalar_select %p284, %s20, 0
        %s286 = sadd.s32 %s285, %s283
        %s287 = smul.addr %s286, 8
        %s288 = scalar_lea.vmem %s2, %s287
      $region40: #{cross_entropy_loss_nchw.1} parent=35 // pred_fallthru
        _
    $region36: #{cross_entropy_loss_nchw.1} parent=5 // pred_fallthru
      _
  $region6: #{cross_entropy_loss_nchw.1} parent=0 // loop_footer
    %s12 = sadd.s32 1, %s8
  $region7: #{cross_entropy_loss_nchw.1} parent=0 // loop_footer_branch
    %7 = sbr.rel target = $region3
  $region8: #{cross_entropy_loss_nchw.1} parent=0 // loop_exit
    _

</llo_original>
